<compile_context>
chip_gen: v7x
topology: tpu7x:2x2x1
jax: 0.10.0
libtpu: 0.0.40
codegen_flags: <defaults>
</compile_context>

<pallas_src>
import functools

import jax
import jax.numpy as jnp
from jax import lax
from jax.experimental import pallas as pl
from jax.experimental.pallas import tpu as pltpu


def _round_up(a, m):
    return (a + m - 1) // m * m


def _cdiv(a, b):
    return (a + b - 1) // b


def _se_kernel(x_ref, xse_ref, w1_ref, b1_ref, w2_ref, b2_ref, o_ref,
               *, approx_gate, mxu_precision):
    # x_ref, xse_ref, o_ref : (C, TILE_HW)  channels on sublanes, spatial on lanes
    # w1_ref, w2_ref        : (C, C)        activation dtype
    # b1_ref, b2_ref        : (C, 1)        f32
    xse = xse_ref[...]

    # conv_reduce (1x1 conv) + ReLU: MXU matmul, f32 accumulation; the spatial
    # tile is the (large) MXU N dimension.
    h = jnp.dot(w1_ref[...], xse, preferred_element_type=jnp.float32,
                precision=mxu_precision)
    h = jnp.maximum(h + b1_ref[...], 0.0)

    # conv_expand (1x1 conv); feed h back in the weight dtype (bf16 stays bf16).
    z = jnp.dot(w2_ref[...], h.astype(w2_ref.dtype),
                preferred_element_type=jnp.float32, precision=mxu_precision)
    z = z + b2_ref[...]

    # Sigmoid via EUP exp + EUP reciprocal (approx only for sub-f32 inputs).
    gate = pl.reciprocal(1.0 + jnp.exp(-z), approx=approx_gate)

    # Gate multiply in the activation dtype (bf16 VALU on v6e/v7x); lane-dense
    # store: last dim is TILE_HW (multiple of 128).
    o_ref[...] = x_ref[...] * gate.astype(o_ref.dtype)


def se_layer_pallas(x, x_se, w1, b1, w2, b2, *, tile_hw=None):
    """SELayer forward.

    x, x_se : (B, C, H, W)  NCHW, same as PyTorch
    w1, w2  : (C, C, 1, 1)  Conv2d weights (out, in, 1, 1)
    b1, b2  : (C,)          Conv2d biases
    """
    B, C, H, W = x.shape
    HW = H * W
    dt = x.dtype
    itemsize = jnp.dtype(dt).itemsize
    is_f32 = jnp.dtype(dt) == jnp.float32

    # Operate directly on NCHW: (B, C, H*W).  No layout transposes, no padding.
    x3 = x.reshape(B, C, HW)
    xse3 = x_se.reshape(B, C, HW)

    # Conv weight (C_out, C_in, 1, 1) -> (C_out, C_in); y = W @ x, no transpose.
    w1m = w1.reshape(C, C).astype(dt)
    w2m = w2.reshape(C, C).astype(dt)
    b1c = b1.reshape(C, 1).astype(jnp.float32)
    b2c = b2.reshape(C, 1).astype(jnp.float32)

    # ---- Generation-aware VMEM budget.
    try:
        vmem_cap = int(pltpu.get_tpu_info().vmem_capacity_bytes)
    except Exception:
        vmem_cap = 64 * 2**20  # conservative (v7x per-TC)
    if vmem_cap >= 100 * 2**20:        # v5e / v6e: 128 MiB parts
        budget, limit_cap = 96 * 2**20, 104 * 2**20
    else:                               # v7x: 64 MiB per TensorCore
        budget, limit_cap = 40 * 2**20, 48 * 2**20

    # Double-buffered (C, C) weights + (C, 1) biases.
    weight_bytes = 2 * (2 * C * C * itemsize) + 2 * (2 * C * 4)

    def vmem_needed(t):
        act = 2 * 3 * C * t * itemsize      # 2x-buffered x, x_se, out tiles
        interm = 3 * C * t * 4              # live f32 intermediates (h, z/gate, ...)
        return act + interm + weight_bytes

    # ---- Tile selection: lane-dense (multiple of 128) and scaled ~1/C so each
    # grid step moves >= ~1.5 MiB of HBM traffic, capped by H*W and the budget.
    target_step_bytes = 3 * (1 << 19)       # ~1.5 MiB of (x + x_se + out) per step
    base = tile_hw if tile_hw is not None else max(
        128, target_step_bytes // (3 * C * itemsize))
    tile = max(128, min(_round_up(base, 128), _round_up(HW, 128)))
    while tile > 128 and vmem_needed(tile) > budget:
        tile -= 128

    # Keep enough grid steps for pipeline overlap / megacore sharding, but
    # never shrink below ~1 MiB of per-step DMA (step overhead would dominate).
    min_steps = 8
    while (tile > 128 and B * _cdiv(HW, tile) < min_steps
           and 3 * C * (tile - 128) * itemsize >= (1 << 20)):
        tile -= 128

    # Ragged H*W: Pallas masks the partial edge block; no wrapper pad/slice.
    grid = (B, _cdiv(HW, tile))

    def act_spec():
        return pl.BlockSpec((None, C, tile), lambda b, i: (b, 0, i))

    def const_spec(shape):
        return pl.BlockSpec(shape, lambda b, i: (0, 0))

    needed = vmem_needed(tile)
    vmem_limit = int(min(max(needed + 8 * 2**20, 32 * 2**20), limit_cap))

    kernel = functools.partial(
        _se_kernel,
        approx_gate=not is_f32,
        mxu_precision=(lax.Precision.HIGHEST if is_f32 else lax.Precision.DEFAULT),
    )

    # TODO(synk): if x_se in the real model is the globally-pooled (B,C,1,1)
    # tensor broadcast to full resolution, compute the gate once per (B, C)
    # column and broadcast it in-kernel to drop the x_se HBM stream and the
    # HW-fold redundant MXU work.

    out3 = pl.pallas_call(
        kernel,
        out_shape=jax.ShapeDtypeStruct((B, C, HW), dt),
        grid_spec=pltpu.PrefetchScalarGridSpec(
            num_scalar_prefetch=0,
            grid=grid,
            in_specs=[
                act_spec(),            # x
                act_spec(),            # x_se
                const_spec((C, C)),    # w1
                const_spec((C, 1)),    # b1
                const_spec((C, C)),    # w2
                const_spec((C, 1)),    # b2
            ],
            out_specs=act_spec(),
        ),
        compiler_params=pltpu.CompilerParams(
            dimension_semantics=("parallel", "parallel"),
            vmem_limit_bytes=vmem_limit,
        ),
    )(x3, xse3, w1m, b1c, w2m, b2c)

    return out3.reshape(B, C, H, W)


def se_layer_ref(x, x_se, w1, b1, w2, b2):
    """Pure-JAX reference matching the PyTorch module (f32 math)."""
    B, C, H, W = x.shape
    xf = x.astype(jnp.float32)
    xsef = x_se.astype(jnp.float32)
    w1m = w1.reshape(C, C).astype(jnp.float32)
    w2m = w2.reshape(C, C).astype(jnp.float32)
    h = jnp.einsum("oc,bchw->bohw", w1m, xsef) + b1.reshape(1, C, 1, 1)
    h = jnp.maximum(h, 0.0)
    z = jnp.einsum("oc,bchw->bohw", w2m, h) + b2.reshape(1, C, 1, 1)
    return xf * jax.nn.sigmoid(z)


def _make_case(key, B, C, H, W, dtype):
    k_x, k_se, k_w1, k_b1, k_w2, k_b2 = jax.random.split(key, 6)
    x = jax.random.normal(k_x, (B, C, H, W), dtype=jnp.float32).astype(dtype)
    x_se = jax.random.normal(k_se, (B, C, H, W), dtype=jnp.float32).astype(dtype)
    w1 = jax.random.normal(k_w1, (C, C, 1, 1), dtype=jnp.float32) * 0.1
    b1 = jax.random.normal(k_b1, (C,), dtype=jnp.float32) * 0.1
    w2 = jax.random.normal(k_w2, (C, C, 1, 1), dtype=jnp.float32) * 0.1
    b2 = jax.random.normal(k_b2, (C,), dtype=jnp.float32) * 0.1
    return x, x_se, w1, b1, w2, b2


if __name__ == "__main__":
    key = jax.random.PRNGKey(0)
    k1, k2 = jax.random.split(key)

    # Case 1: nominal small shape, f32 (matches the module spec).
    args = _make_case(k1, 2, 4, 16, 16, jnp.float32)
    out = jax.block_until_ready(se_layer_pallas(*args))
    ref = se_layer_ref(*args)
    assert out.shape == (2, 4, 16, 16)
    assert jnp.allclose(out.astype(jnp.float32), ref, atol=1e-4, rtol=1e-4), \
        "f32 mismatch vs reference"

    # Case 2: realistic channel count, bf16 activations/weights, ragged H*W
    # (exercises lane-dense tiling, the MXU path with spatial as the N dim,
    #  the bf16 second-matmul operand, the bf16 gating multiply, and the
    #  Pallas-masked partial edge block -- no wrapper pad/slice anymore).
    args = _make_case(k2, 2, 64, 24, 24, jnp.bfloat16)
    out = jax.block_until_ready(se_layer_pallas(*args))
    ref = se_layer_ref(*args)
    assert out.shape == (2, 64, 24, 24)
    assert jnp.allclose(out.astype(jnp.float32), ref, atol=1e-1, rtol=1e-1), \
        "bf16 mismatch vs reference"

    print("KERNEL_OK")
</pallas_src>

<mosaic_0001>
module attributes {stable_mosaic.version = 11 : i64} {
  func.func @_se_kernel(%arg0: i32, %arg1: i32, %arg2: memref<1x4x256xf32, #tpu.memory_space<vmem>>, %arg3: memref<1x4x256xf32, #tpu.memory_space<vmem>>, %arg4: memref<4x4xf32, #tpu.memory_space<vmem>>, %arg5: memref<4x1xf32, #tpu.memory_space<vmem>>, %arg6: memref<4x4xf32, #tpu.memory_space<vmem>>, %arg7: memref<4x1xf32, #tpu.memory_space<vmem>>, %arg8: memref<1x4x256xf32, #tpu.memory_space<vmem>>) attributes {dimension_semantics = [#tpu.dimension_semantics<parallel>, #tpu.dimension_semantics<parallel>], iteration_bounds = array<i64: 2, 1>, scalar_prefetch = 0 : i64, scratch_operands = 0 : i64, tpu.core_type = #tpu.core_type<tc>, window_params = [{transform_indices = @transform_0, window_bounds = array<i64: 1, 4, 256>}, {transform_indices = @transform_1, window_bounds = array<i64: 1, 4, 256>}, {pipeline_mode = #tpu.pipeline_mode<synchronous>, transform_indices = @transform_2, window_bounds = array<i64: 4, 4>}, {pipeline_mode = #tpu.pipeline_mode<synchronous>, transform_indices = @transform_3, window_bounds = array<i64: 4, 1>}, {pipeline_mode = #tpu.pipeline_mode<synchronous>, transform_indices = @transform_4, window_bounds = array<i64: 4, 4>}, {pipeline_mode = #tpu.pipeline_mode<synchronous>, transform_indices = @transform_5, window_bounds = array<i64: 4, 1>}, {transform_indices = @transform_6, window_bounds = array<i64: 1, 4, 256>}]} {
    %c0 = arith.constant 0 : index
    %c0_0 = arith.constant 0 : index
    %c0_1 = arith.constant 0 : index
    %0 = vector.load %arg3[%c0, %c0_0, %c0_1] : memref<1x4x256xf32, #tpu.memory_space<vmem>>, vector<1x4x256xf32>
    %1 = vector.shape_cast %0 : vector<1x4x256xf32> to vector<4x256xf32>
    %c0_2 = arith.constant 0 : index
    %c0_3 = arith.constant 0 : index
    %2 = vector.load %arg4[%c0_2, %c0_3] : memref<4x4xf32, #tpu.memory_space<vmem>>, vector<4x4xf32>
    %cst = arith.constant dense<0.000000e+00> : vector<4x256xf32>
    %3 = tpu.matmul %2, %1, %cst {dimension_numbers = #tpu.dot_dimension_numbers<[1], [0], [0], [1], [0, 0, 1, 1], [], []>, precision = #tpu.contract_precision<fp32>} : vector<4x4xf32>, vector<4x256xf32>, vector<4x256xf32> -> vector<4x256xf32>
    %c0_4 = arith.constant 0 : index
    %c0_5 = arith.constant 0 : index
    %4 = vector.load %arg5[%c0_4, %c0_5] : memref<4x1xf32, #tpu.memory_space<vmem>>, vector<4x1xf32>
    %5 = vector.broadcast %4 : vector<4x1xf32> to vector<4x256xf32>
    %6 = arith.addf %3, %5 : vector<4x256xf32>
    %cst_6 = arith.constant 0.000000e+00 : f32
    %7 = vector.broadcast %cst_6 : f32 to vector<4x256xf32>
    %8 = arith.maximumf %6, %7 : vector<4x256xf32>
    %c0_7 = arith.constant 0 : index
    %c0_8 = arith.constant 0 : index
    %9 = vector.load %arg6[%c0_7, %c0_8] : memref<4x4xf32, #tpu.memory_space<vmem>>, vector<4x4xf32>
    %cst_9 = arith.constant dense<0.000000e+00> : vector<4x256xf32>
    %10 = tpu.matmul %9, %8, %cst_9 {dimension_numbers = #tpu.dot_dimension_numbers<[1], [0], [0], [1], [0, 0, 1, 1], [], []>, precision = #tpu.contract_precision<fp32>} : vector<4x4xf32>, vector<4x256xf32>, vector<4x256xf32> -> vector<4x256xf32>
    %c0_10 = arith.constant 0 : index
    %c0_11 = arith.constant 0 : index
    %11 = vector.load %arg7[%c0_10, %c0_11] : memref<4x1xf32, #tpu.memory_space<vmem>>, vector<4x1xf32>
    %12 = vector.broadcast %11 : vector<4x1xf32> to vector<4x256xf32>
    %13 = arith.addf %10, %12 : vector<4x256xf32>
    %cst_12 = arith.constant 0.000000e+00 : f32
    %14 = vector.broadcast %cst_12 : f32 to vector<4x256xf32>
    %15 = arith.subf %14, %13 : vector<4x256xf32>
    %16 = math.exp %15 : vector<4x256xf32>
    %cst_13 = arith.constant 1.000000e+00 : f32
    %17 = vector.broadcast %cst_13 : f32 to vector<4x256xf32>
    %18 = arith.addf %17, %16 : vector<4x256xf32>
    %19 = tpu.reciprocal %18 : vector<4x256xf32> -> vector<4x256xf32>
    %c0_14 = arith.constant 0 : index
    %c0_15 = arith.constant 0 : index
    %c0_16 = arith.constant 0 : index
    %20 = vector.load %arg2[%c0_14, %c0_15, %c0_16] : memref<1x4x256xf32, #tpu.memory_space<vmem>>, vector<1x4x256xf32>
    %21 = vector.shape_cast %20 : vector<1x4x256xf32> to vector<4x256xf32>
    %22 = arith.mulf %21, %19 : vector<4x256xf32>
    %c0_17 = arith.constant 0 : index
    %c0_18 = arith.constant 0 : index
    %c0_19 = arith.constant 0 : index
    %23 = vector.load %arg8[%c0_17, %c0_18, %c0_19] : memref<1x4x256xf32, #tpu.memory_space<vmem>>, vector<1x4x256xf32>
    %24 = vector.shape_cast %23 : vector<1x4x256xf32> to vector<4x256xf32>
    %25 = vector.shape_cast %22 : vector<4x256xf32> to vector<1x4x256xf32>
    tpu.vector_store %arg8[%c0_17, %c0_18, %c0_19], %25 {strides = array<i32>} : memref<1x4x256xf32, #tpu.memory_space<vmem>>, vector<1x4x256xf32>,
    return
  }
  func.func @transform_0(%arg0: i32, %arg1: i32) -> (i32, i32, i32) {
    %c0_i32 = arith.constant 0 : i32
    %c0_i32_0 = arith.constant 0 : i32
    return %arg0, %c0_i32, %arg1 : i32, i32, i32
  }
  func.func @transform_1(%arg0: i32, %arg1: i32) -> (i32, i32, i32) {
    %c0_i32 = arith.constant 0 : i32
    %c0_i32_0 = arith.constant 0 : i32
    return %arg0, %c0_i32, %arg1 : i32, i32, i32
  }
  func.func @transform_2(%arg0: i32, %arg1: i32) -> (i32, i32) {
    %c0_i32 = arith.constant 0 : i32
    %c0_i32_0 = arith.constant 0 : i32
    %c0_i32_1 = arith.constant 0 : i32
    return %c0_i32, %c0_i32_0 : i32, i32
  }
  func.func @transform_3(%arg0: i32, %arg1: i32) -> (i32, i32) {
    %c0_i32 = arith.constant 0 : i32
    %c0_i32_0 = arith.constant 0 : i32
    %c0_i32_1 = arith.constant 0 : i32
    return %c0_i32, %c0_i32_0 : i32, i32
  }
  func.func @transform_4(%arg0: i32, %arg1: i32) -> (i32, i32) {
    %c0_i32 = arith.constant 0 : i32
    %c0_i32_0 = arith.constant 0 : i32
    %c0_i32_1 = arith.constant 0 : i32
    return %c0_i32, %c0_i32_0 : i32, i32
  }
  func.func @transform_5(%arg0: i32, %arg1: i32) -> (i32, i32) {
    %c0_i32 = arith.constant 0 : i32
    %c0_i32_0 = arith.constant 0 : i32
    %c0_i32_1 = arith.constant 0 : i32
    return %c0_i32, %c0_i32_0 : i32, i32
  }
  func.func @transform_6(%arg0: i32, %arg1: i32) -> (i32, i32, i32) {
    %c0_i32 = arith.constant 0 : i32
    %c0_i32_0 = arith.constant 0 : i32
    return %arg0, %c0_i32, %arg1 : i32, i32, i32
  }
}

</mosaic_0001>

<llo_original>
// kernel: tpu_custom_call.1
$region0: #{tpu_custom_call.1}
  #allocation0 [shape = 'u32[]', space=smem, size = 0x4, offset = 0x4, fixed_abs, tag = 'smem constant byte address 0x4 - core index']
  #allocation1 [shape = 'u32[144,128]{1,0:T(1,128)}', space=vmem, size = 0x12000, scoped, tag = 'internal scratch']
  %s0 = inlined_call_operand.hbm [shape: f32[2,4,256], index: 0, kind: input, shape index: {}]
  %s1 = inlined_call_operand.hbm [shape: f32[2,4,256], index: 1, kind: input, shape index: {}]
  %s2 = inlined_call_operand.vmem [shape: f32[4,4], index: 2, kind: input, shape index: {}]
  %s3 = inlined_call_operand.vmem [shape: f32[4,1], index: 3, kind: input, shape index: {}]
  %s4 = inlined_call_operand.vmem [shape: f32[4,4], index: 4, kind: input, shape index: {}]
  %s5 = inlined_call_operand.vmem [shape: f32[4,1], index: 5, kind: input, shape index: {}]
  %s6 = inlined_call_operand.hbm [shape: f32[2,4,256], index: 6, kind: output, shape index: {}]
  %s7 = sld [smem:[#allocation0]]
  $region65: #{tpu_custom_call.1} parent=0
    _
  %s9 = ssub.s32 1, %s7
  %s10 = scalar_select 0, %s9, %s7
  $region1: #{tpu_custom_call.1} parent=0
    #allocation2 [shape = 'u8[8192]{0}', space=vmem, size = 0x2000, scoped, tag = 'input window, operand 0']
    #allocation3 [shape = 's32[2]{0}', space=sflag, size = 0x8, scoped, tag = 'scoped memory for tpu_custom_call.1']
    #allocation4 [shape = 's32[2]{0}', space=sflag, size = 0x8, scoped, tag = 'scoped memory for tpu_custom_call.1']
    #allocation5 [shape = 'u8[8192]{0}', space=vmem, size = 0x2000, scoped, tag = 'input window, operand 1']
    #allocation6 [shape = 's32[2]{0}', space=sflag, size = 0x8, scoped, tag = 'scoped memory for tpu_custom_call.1']
    #allocation7 [shape = 'u8[8192]{0}', space=vmem, size = 0x2000, scoped, tag = 'output window, operand 0']
    %11 = vsyncpa [#allocation3], 0
    %s12 = scalar_lea.sflag [#allocation3], 1
    %13 = vsyncpa %s12, 0
    %14 = vsyncpa [#allocation6], 0
    %s15 = scalar_lea.sflag [#allocation6], 1
    %16 = vsyncpa %s15, 0
    %17 = vsyncpa [#allocation4], 0
    %s18 = scalar_lea.sflag [#allocation4], 1
    %19 = vsyncpa %s18, 0
    loop: start=0, step=1, limit=4
    $region2: #{tpu_custom_call.1} parent=1 // loop_pre_header
      _
    $region3: #{tpu_custom_call.1} parent=1 // loop_header
      %s21 = sphi 0, %s25
      %p22 = scmp.ge.s32.totalorder %s21, 4
      %s28 = sphi 0, %s40
      %s29 = sphi 0, %s36
      %s30 = sphi 0, %s28
      %s31 = sphi 0, %s29
      %s32 = sphi 0, %s30
      %s33 = sphi 0, %s31
      %s45 = sphi 0, %s47
      %s48 = sphi 0, %s45
      %s49 = sphi 0, %s48
      %s65 = sphi 0, %s49
      %s73 = sphi 0, %s75
      %s76 = sphi 0, %s73
      %s77 = sphi 0, %s76
      %s93 = sphi 0, %s77
      %s97 = sphi 0, %s97
      %s99 = sphi 0, %s97
      %s100 = sphi 0, %s99
      %s114 = sphi 0, %s100
      %s118 = sphi 0, %s118
      %s120 = sphi 0, %s118
      %s121 = sphi 0, %s120
      %s135 = sphi 0, %s121
      %s139 = sphi 0, %s139
      %s141 = sphi 0, %s139
      %s142 = sphi 0, %s141
      %s156 = sphi 0, %s142
      %s160 = sphi 0, %s160
      %s162 = sphi 0, %s160
      %s163 = sphi 0, %s162
      %s177 = sphi 0, %s163
      %s185 = sphi 0, %s187
      %s188 = sphi 0, %s185
      %s189 = sphi 0, %s188
      %s205 = sphi 0, %s189
    $region4: #{tpu_custom_call.1} parent=1 // loop_header_branch
      %24 = sbr.rel (%p22) target = $region8
    $region5: #{tpu_custom_call.1} parent=1 // loop_body
      %s26 = ssub.s32 %s21, 1
      %s27 = ssub.s32 %s21, 2
      %s34 = sadd.s32 1, %s29
      %p35 = scmp.ge.s32.totalorder %s34, 1
      %s36 = scalar_select %p35, 0, %s34
      %s37 = sadd.s32 1, %s28
      %s38 = scalar_select %p35, %s37, %s28
      %p39 = scmp.ge.s32.totalorder %s38, 2
      %s40 = scalar_select %p39, 0, %s38
      %s41 = ssub.s32 %s28, %s40
      %s42 = ssub.s32 %s29, %s36
      %s43 = sor.u32 %s41, %s42
      %p44 = scmp.eq.s32.totalorder %s43, 0
      %s46 = sadd.s32 %s45, 1
      %s47 = scalar_select %p44, %s45, %s46
      %p50 = pneg %p44
      %p51 = scmp.eq.s32.totalorder %s21, 1
      %p52 = por %p50, %p51
      %p53 = scmp.ne.s32.totalorder %s45, %s48
      %p54 = scmp.eq.s32.totalorder %s21, 0
      %p55 = por %p53, %p54
      %p56 = scmp.ne.s32.totalorder %s45, %s48
      %p57 = scmp.eq.s32.totalorder %s26, 1
      %p58 = por %p56, %p57
      %p59 = scmp.ne.s32.totalorder %s48, %s49
      %p60 = scmp.eq.s32.totalorder %s26, 0
      %p61 = por %p59, %p60
      %p62 = scmp.ne.s32.totalorder %s48, %s49
      %p63 = scmp.eq.s32.totalorder %s27, 1
      %p64 = por %p62, %p63
      %p66 = scmp.ne.s32.totalorder %s49, %s65
      %p67 = scmp.eq.s32.totalorder %s27, 0
      %p68 = por %p66, %p67
      %s69 = ssub.s32 %s28, %s40
      %s70 = ssub.s32 %s29, %s36
      %s71 = sor.u32 %s69, %s70
      %p72 = scmp.eq.s32.totalorder %s71, 0
      %s74 = sadd.s32 %s73, 1
      %s75 = scalar_select %p72, %s73, %s74
      %p78 = pneg %p72
      %p79 = scmp.eq.s32.totalorder %s21, 1
      %p80 = por %p78, %p79
      %p81 = scmp.ne.s32.totalorder %s73, %s76
      %p82 = scmp.eq.s32.totalorder %s21, 0
      %p83 = por %p81, %p82
      %p84 = scmp.ne.s32.totalorder %s73, %s76
      %p85 = scmp.eq.s32.totalorder %s26, 1
      %p86 = por %p84, %p85
      %p87 = scmp.ne.s32.totalorder %s76, %s77
      %p88 = scmp.eq.s32.totalorder %s26, 0
      %p89 = por %p87, %p88
      %p90 = scmp.ne.s32.totalorder %s76, %s77
      %p91 = scmp.eq.s32.totalorder %s27, 1
      %p92 = por %p90, %p91
      %p94 = scmp.ne.s32.totalorder %s77, %s93
      %p95 = scmp.eq.s32.totalorder %s27, 0
      %p96 = por %p94, %p95
      %s98 = sadd.s32 %s97, 1
      %p101 = scmp.eq.s32.totalorder %s21, 1
      %p102 = scmp.ne.s32.totalorder %s97, %s99
      %p103 = scmp.eq.s32.totalorder %s21, 0
      %p104 = por %p102, %p103
      %p105 = scmp.ne.s32.totalorder %s97, %s99
      %p106 = scmp.eq.s32.totalorder %s26, 1
      %p107 = por %p105, %p106
      %p108 = scmp.ne.s32.totalorder %s99, %s100
      %p109 = scmp.eq.s32.totalorder %s26, 0
      %p110 = por %p108, %p109
      %p111 = scmp.ne.s32.totalorder %s99, %s100
      %p112 = scmp.eq.s32.totalorder %s27, 1
      %p113 = por %p111, %p112
      %p115 = scmp.ne.s32.totalorder %s100, %s114
      %p116 = scmp.eq.s32.totalorder %s27, 0
      %p117 = por %p115, %p116
      %s119 = sadd.s32 %s118, 1
      %p122 = scmp.eq.s32.totalorder %s21, 1
      %p123 = scmp.ne.s32.totalorder %s118, %s120
      %p124 = scmp.eq.s32.totalorder %s21, 0
      %p125 = por %p123, %p124
      %p126 = scmp.ne.s32.totalorder %s118, %s120
      %p127 = scmp.eq.s32.totalorder %s26, 1
      %p128 = por %p126, %p127
      %p129 = scmp.ne.s32.totalorder %s120, %s121
      %p130 = scmp.eq.s32.totalorder %s26, 0
      %p131 = por %p129, %p130
      %p132 = scmp.ne.s32.totalorder %s120, %s121
      %p133 = scmp.eq.s32.totalorder %s27, 1
      %p134 = por %p132, %p133
      %p136 = scmp.ne.s32.totalorder %s121, %s135
      %p137 = scmp.eq.s32.totalorder %s27, 0
      %p138 = por %p136, %p137
      %s140 = sadd.s32 %s139, 1
      %p143 = scmp.eq.s32.totalorder %s21, 1
      %p144 = scmp.ne.s32.totalorder %s139, %s141
      %p145 = scmp.eq.s32.totalorder %s21, 0
      %p146 = por %p144, %p145
      %p147 = scmp.ne.s32.totalorder %s139, %s141
      %p148 = scmp.eq.s32.totalorder %s26, 1
      %p149 = por %p147, %p148
      %p150 = scmp.ne.s32.totalorder %s141, %s142
      %p151 = scmp.eq.s32.totalorder %s26, 0
      %p152 = por %p150, %p151
      %p153 = scmp.ne.s32.totalorder %s141, %s142
      %p154 = scmp.eq.s32.totalorder %s27, 1
      %p155 = por %p153, %p154
      %p157 = scmp.ne.s32.totalorder %s142, %s156
      %p158 = scmp.eq.s32.totalorder %s27, 0
      %p159 = por %p157, %p158
      %s161 = sadd.s32 %s160, 1
      %p164 = scmp.eq.s32.totalorder %s21, 1
      %p165 = scmp.ne.s32.totalorder %s160, %s162
      %p166 = scmp.eq.s32.totalorder %s21, 0
      %p167 = por %p165, %p166
      %p168 = scmp.ne.s32.totalorder %s160, %s162
      %p169 = scmp.eq.s32.totalorder %s26, 1
      %p170 = por %p168, %p169
      %p171 = scmp.ne.s32.totalorder %s162, %s163
      %p172 = scmp.eq.s32.totalorder %s26, 0
      %p173 = por %p171, %p172
      %p174 = scmp.ne.s32.totalorder %s162, %s163
      %p175 = scmp.eq.s32.totalorder %s27, 1
      %p176 = por %p174, %p175
      %p178 = scmp.ne.s32.totalorder %s163, %s177
      %p179 = scmp.eq.s32.totalorder %s27, 0
      %p180 = por %p178, %p179
      %s181 = ssub.s32 %s28, %s40
      %s182 = ssub.s32 %s29, %s36
      %s183 = sor.u32 %s181, %s182
      %p184 = scmp.eq.s32.totalorder %s183, 0
      %s186 = sadd.s32 %s185, 1
      %s187 = scalar_select %p184, %s185, %s186
      %p190 = pneg %p184
      %p191 = scmp.eq.s32.totalorder %s21, 1
      %p192 = por %p190, %p191
      %p193 = scmp.ne.s32.totalorder %s185, %s188
      %p194 = scmp.eq.s32.totalorder %s21, 0
      %p195 = por %p193, %p194
      %p196 = scmp.ne.s32.totalorder %s185, %s188
      %p197 = scmp.eq.s32.totalorder %s26, 1
      %p198 = por %p196, %p197
      %p199 = scmp.ne.s32.totalorder %s188, %s189
      %p200 = scmp.eq.s32.totalorder %s26, 0
      %p201 = por %p199, %p200
      %p202 = scmp.ne.s32.totalorder %s188, %s189
      %p203 = scmp.eq.s32.totalorder %s27, 1
      %p204 = por %p202, %p203
      %p206 = scmp.ne.s32.totalorder %s189, %s205
      %p207 = scmp.eq.s32.totalorder %s27, 0
      %p208 = por %p206, %p207
      %p209 = scmp.le.s32.totalorder 1, %s21
      %p210 = scmp.lt.s32.totalorder %s21, 3
      %p211 = pnand %p209, %p210
      %p212 = pneg %p211
      // Predicated region
      $region9: #{tpu_custom_call.1} parent=5 // pred_check
        _
      $region10: #{tpu_custom_call.1} parent=5 // pred_check_branch
        %214 = sbr.rel (%p211) target = $region12
      $region11: #{tpu_custom_call.1} parent=5 // pred_region
        %s215 = ssub.s32 %s21, 1
        // Predicated region
        $region13: #{tpu_custom_call.1} parent=11 // pred_check
          %p216 = pneg %p110
        $region14: #{tpu_custom_call.1} parent=11 // pred_check_branch
          %218 = sbr.rel (%p216) target = $region16
        $region15: #{tpu_custom_call.1} parent=11 // pred_region
          _
        $region16: #{tpu_custom_call.1} parent=11 // pred_fallthru
          _
        // Predicated region
        $region17: #{tpu_custom_call.1} parent=11 // pred_check
          %p219 = pneg %p131
        $region18: #{tpu_custom_call.1} parent=11 // pred_check_branch
          %221 = sbr.rel (%p219) target = $region20
        $region19: #{tpu_custom_call.1} parent=11 // pred_region
          _
        $region20: #{tpu_custom_call.1} parent=11 // pred_fallthru
          _
        // Predicated region
        $region21: #{tpu_custom_call.1} parent=11 // pred_check
          %p222 = pneg %p152
        $region22: #{tpu_custom_call.1} parent=11 // pred_check_branch
          %224 = sbr.rel (%p222) target = $region24
        $region23: #{tpu_custom_call.1} parent=11 // pred_region
          _
        $region24: #{tpu_custom_call.1} parent=11 // pred_fallthru
          _
        // Predicated region
        $region25: #{tpu_custom_call.1} parent=11 // pred_check
          %p225 = pneg %p173
        $region26: #{tpu_custom_call.1} parent=11 // pred_check_branch
          %227 = sbr.rel (%p225) target = $region28
        $region27: #{tpu_custom_call.1} parent=11 // pred_region
          _
        $region28: #{tpu_custom_call.1} parent=11 // pred_fallthru
          _
      $region12: #{tpu_custom_call.1} parent=5 // pred_fallthru
        _
      %p228 = scmp.lt.s32.totalorder %s21, 2
      // Predicated region
      $region29: #{tpu_custom_call.1} parent=5 // pred_check
        %p229 = pneg %p228
      $region30: #{tpu_custom_call.1} parent=5 // pred_check_branch
        %231 = sbr.rel (%p229) target = $region32
      $region31: #{tpu_custom_call.1} parent=5 // pred_region
        // Predicated region
        $region33: #{tpu_custom_call.1} parent=31 // pred_check
          %p232 = pneg %p55
        $region34: #{tpu_custom_call.1} parent=31 // pred_check_branch
          %234 = sbr.rel (%p232) target = $region36
        $region35: #{tpu_custom_call.1} parent=31 // pred_region
          %s235 = sand.u32 %s45, 1
          %s236 = scalar_lea.sflag [#allocation3], %s235
          %s237 = sand.u32 %s45, 1
          %s238 = smul.addr %s237, 8
          %s239 = scalar_lea.vmem [#allocation2], %s238
          %s240 = smul.u32 2, %s29
          %s242 = ssub.s32 128, 128
          %243 = vsyncadd %s236, %s242
          %s244 = smul.addr %s28, 2
          %s245 = sadd.s32 %s240, %s244
          %s246 = smul.addr %s245, 64
          %s247 = scalar_lea.hbm %s0, %s246
          %s249 = sshll.u32 %s239, 4
          %s250 = int_to_ptr.vmem [resolvable:$true] %s249
          %252 = dma.hbm_to_vmem [thread:$0]  %s247, 128, %s250, %s236
        $region36: #{tpu_custom_call.1} parent=31 // pred_fallthru
          _
        // Predicated region
        $region37: #{tpu_custom_call.1} parent=31 // pred_check
          %p253 = pneg %p83
        $region38: #{tpu_custom_call.1} parent=31 // pred_check_branch
          %255 = sbr.rel (%p253) target = $region40
        $region39: #{tpu_custom_call.1} parent=31 // pred_region
          %s256 = sand.u32 %s73, 1
          %s257 = scalar_lea.sflag [#allocation6], %s256
          %s258 = sand.u32 %s73, 1
          %s259 = smul.addr %s258, 8
          %s260 = scalar_lea.vmem [#allocation5], %s259
          %s261 = smul.u32 2, %s29
          %s263 = ssub.s32 128, 128
          %264 = vsyncadd %s257, %s263
          %s265 = smul.addr %s28, 2
          %s266 = sadd.s32 %s261, %s265
          %s267 = smul.addr %s266, 64
          %s268 = scalar_lea.hbm %s1, %s267
          %s270 = sshll.u32 %s260, 4
          %s271 = int_to_ptr.vmem [resolvable:$true] %s270
          %273 = dma.hbm_to_vmem [thread:$0]  %s268, 128, %s271, %s257
        $region40: #{tpu_custom_call.1} parent=31 // pred_fallthru
          _
      $region32: #{tpu_custom_call.1} parent=5 // pred_fallthru
        _
      %p274 = scmp.le.s32.totalorder 1, %s21
      %p275 = scmp.lt.s32.totalorder %s21, 3
      %p276 = pnand %p274, %p275
      %p277 = pneg %p276
      // Predicated region
      $region41: #{tpu_custom_call.1} parent=5 // pred_check
        _
      $region42: #{tpu_custom_call.1} parent=5 // pred_check_branch
        %279 = sbr.rel (%p276) target = $region44
      $region43: #{tpu_custom_call.1} parent=5 // pred_region
        %s280 = ssub.s32 %s21, 1
        %s281 = sand.u32 %s48, 1
        %s282 = scalar_lea.sflag [#allocation3], %s281
        %s283 = sand.u32 %s48, 1
        %s284 = smul.addr %s283, 8
        %s285 = scalar_lea.vmem [#allocation2], %s284
        // Predicated region
        $region45: #{tpu_custom_call.1} parent=43 // pred_check
          %p286 = pneg %p61
        $region46: #{tpu_custom_call.1} parent=43 // pred_check_branch
          %288 = sbr.rel (%p286) target = $region48
        $region47: #{tpu_custom_call.1} parent=43 // pred_region
          %289 = dma.done %s282, 128
        $region48: #{tpu_custom_call.1} parent=43 // pred_fallthru
          _
        %s290 = sand.u32 %s76, 1
        %s291 = scalar_lea.sflag [#allocation6], %s290
        %s292 = sand.u32 %s76, 1
        %s293 = smul.addr %s292, 8
        %s294 = scalar_lea.vmem [#allocation5], %s293
        // Predicated region
        $region49: #{tpu_custom_call.1} parent=43 // pred_check
          %p295 = pneg %p89
        $region50: #{tpu_custom_call.1} parent=43 // pred_check_branch
          %297 = sbr.rel (%p295) target = $region52
        $region51: #{tpu_custom_call.1} parent=43 // pred_region
          %298 = dma.done %s291, 128
        $region52: #{tpu_custom_call.1} parent=43 // pred_fallthru
          _
        %s299 = sand.u32 %s48, 1
        %s300 = scalar_lea.sflag [#allocation3], %s299
        %s301 = sand.u32 %s48, 1
        %s302 = smul.addr %s301, 8
        %s303 = scalar_lea.vmem [#allocation2], %s302
        %p304 = pneg %p61
        %p305 = pneg %p58
        %s306 = sand.u32 %s76, 1
        %s307 = scalar_lea.sflag [#allocation6], %s306
        %s308 = sand.u32 %s76, 1
        %s309 = smul.addr %s308, 8
        %s310 = scalar_lea.vmem [#allocation5], %s309
        %p311 = pneg %p89
        %p312 = pneg %p86
        %p313 = pneg %p110
        %p314 = pneg %p107
        %p315 = pneg %p131
        %p316 = pneg %p128
        %p317 = pneg %p152
        %p318 = pneg %p149
        %p319 = pneg %p173
        %p320 = pneg %p170
        %p321 = pneg %p201
        %p322 = pneg %p198
        %s323 = sand.u32 %s188, 1
        %s324 = scalar_lea.sflag [#allocation4], %s323
        %s325 = sand.u32 %s188, 1
        %s326 = smul.addr %s325, 8
        %s327 = scalar_lea.vmem [#allocation7], %s326
        %s328 = smul.u32 2, %s31
        %s329 = smul.u32 2, %s31
        %s330 = smul.u32 2, %s31
        %v331 = vld [vmem:[%s294] sm:$0xff]
        %v332 = vld [vmem:[%s2] sm:$0xf]
        %v333 = vld [vmem:[%s3] sm:$0xf]
        %335 = vset.pattern.permute.xlu0 0
        %336 = vperm.xlu0 %335, %v333
        %v337 = vpop.permute.xlu0 %336
        %v340 = vcombine.high %v331, %v331
        %vm341 = vcmask 31744
        %v343 = vsel %vm341, %v332, 0
        %vm345 = vcmask 1043456
        %v346 = vsel %vm345, %v331, 0
        %v348 = vsel %vm345, %v340, 0
        %v350 = vand.u32 %v348, 4294901760
        %351 = vmatprep.subr.mxu0 %v350
        %v352 = vand.u32 %v346, 4294901760
        %353 = vmatpush1.msra.mxu0 %v352
        %354 = vmatprep.subr.mxu0 0.0
        %355 = vmatpush1.msra.mxu0 0.0
        %356 = vmatprep.subr.mxu0 0.0
        %357 = vmatpush1.msra.mxu0 0.0
        %358 = vmatprep.subr.mxu0 0.0
        %359 = vmatpush1.msra.mxu0 0.0
        %360 = vmatprep.subr.mxu0 0.0
        %361 = vmatpush1.msra.mxu0 0.0
        %362 = vmatprep.subr.mxu0 0.0
        %363 = vmatpush1.msra.mxu0 0.0
        %364 = vmatprep.subr.mxu0 0.0
        %365 = vmatpush1.msra.mxu0 0.0
        %366 = vmatprep.subr.mxu0 0.0
        %367 = vmatpush1.msra.mxu0 0.0
        %368 = vmatprep.subr.mxu0 0.0
        %369 = vmatpush1.msra.mxu0 0.0
        %370 = vmatprep.subr.mxu0 0.0
        %371 = vmatpush1.msra.mxu0 0.0
        %372 = vmatprep.subr.mxu0 0.0
        %373 = vmatpush1.msra.mxu0 0.0
        %374 = vmatprep.subr.mxu0 0.0
        %375 = vmatpush1.msra.mxu0 0.0
        %376 = vmatprep.subr.mxu0 0.0
        %377 = vmatpush1.msra.mxu0 0.0
        %378 = vmatprep.subr.mxu0 0.0
        %379 = vmatpush1.msra.mxu0 0.0
        %380 = vmatprep.subr.mxu0 0.0
        %381 = vmatpush1.msra.mxu0 0.0
        %382 = vmatprep.subr.mxu0 0.0
        %383 = vmatpush1.msra.mxu0 0.0
        %384 = vmatprep.subr.mxu0 0.0
        %385 = vmatpush1.msra.mxu0 0.0
        %386 = vmatprep.subr.mxu0 0.0
        %387 = vmatpush1.msra.mxu0 0.0
        %388 = vmatprep.subr.mxu0 0.0
        %389 = vmatpush1.msra.mxu0 0.0
        %390 = vmatprep.subr.mxu0 0.0
        %391 = vmatpush1.msra.mxu0 0.0
        %392 = vmatprep.subr.mxu0 0.0
        %393 = vmatpush1.msra.mxu0 0.0
        %394 = vmatprep.subr.mxu0 0.0
        %395 = vmatpush1.msra.mxu0 0.0
        %396 = vmatprep.subr.mxu0 0.0
        %397 = vmatpush1.msra.mxu0 0.0
        %398 = vmatprep.subr.mxu0 0.0
        %399 = vmatpush1.msra.mxu0 0.0
        %400 = vmatprep.subr.mxu0 0.0
        %401 = vmatpush1.msra.mxu0 0.0
        %402 = vmatprep.subr.mxu0 0.0
        %403 = vmatpush1.msra.mxu0 0.0
        %404 = vmatprep.subr.mxu0 0.0
        %405 = vmatpush1.msra.mxu0 0.0
        %406 = vmatprep.subr.mxu0 0.0
        %407 = vmatpush1.msra.mxu0 0.0
        %408 = vmatprep.subr.mxu0 0.0
        %409 = vmatpush1.msra.mxu0 0.0
        %410 = vmatprep.subr.mxu0 0.0
        %411 = vmatpush1.msra.mxu0 0.0
        %412 = vmatprep.subr.mxu0 0.0
        %413 = vmatpush1.msra.mxu0 0.0
        %414 = vmatprep.subr.mxu0 0.0
        %415 = vmatpush1.msra.mxu0 0.0
        %416 = vmatprep.mubr.f32.mxu0 0.0
        %v417 = vand.u32 %v343, 4294901760
        %v418 = vsub.f32 %v343, %v417
        %v419 = vand.u32 %v418, 4294901760
        %v420 = vsub.f32 %v418, %v419
        %v421 = vand.u32 %v420, 4294901760
        %422 = vmatmul.mubr.f32.gmra.mrb[0].mxu0 %v421
        %v423 = vpop.f32.mrb[0].mxu0
        %v424 = vadd.f32 %v337, %v423
        %v425 = vpop.f32.mrb[0].mxu0
        %v426 = vadd.f32 %v337, %v425
        %427 = vdwg.mxu0
        %v428 = vand.u32 %v348, 4294901760
        %v429 = vsub.f32 %v348, %v428
        %v430 = vand.u32 %v429, 4294901760
        %v431 = vsub.f32 %v429, %v430
        %v432 = vand.u32 %v431, 4294901760
        %433 = vmatprep.subr.mxu0 %v432
        %v434 = vand.u32 %v346, 4294901760
        %v435 = vsub.f32 %v346, %v434
        %v436 = vand.u32 %v435, 4294901760
        %v437 = vsub.f32 %v435, %v436
        %v438 = vand.u32 %v437, 4294901760
        %439 = vmatpush1.msra.mxu0 %v438
        %440 = vmatprep.subr.mxu0 0.0
        %441 = vmatpush1.msra.mxu0 0.0
        %442 = vmatprep.subr.mxu0 0.0
        %443 = vmatpush1.msra.mxu0 0.0
        %444 = vmatprep.subr.mxu0 0.0
        %445 = vmatpush1.msra.mxu0 0.0
        %446 = vmatprep.subr.mxu0 0.0
        %447 = vmatpush1.msra.mxu0 0.0
        %448 = vmatprep.subr.mxu0 0.0
        %449 = vmatpush1.msra.mxu0 0.0
        %450 = vmatprep.subr.mxu0 0.0
        %451 = vmatpush1.msra.mxu0 0.0
        %452 = vmatprep.subr.mxu0 0.0
        %453 = vmatpush1.msra.mxu0 0.0
        %454 = vmatprep.subr.mxu0 0.0
        %455 = vmatpush1.msra.mxu0 0.0
        %456 = vmatprep.subr.mxu0 0.0
        %457 = vmatpush1.msra.mxu0 0.0
        %458 = vmatprep.subr.mxu0 0.0
        %459 = vmatpush1.msra.mxu0 0.0
        %460 = vmatprep.subr.mxu0 0.0
        %461 = vmatpush1.msra.mxu0 0.0
        %462 = vmatprep.subr.mxu0 0.0
        %463 = vmatpush1.msra.mxu0 0.0
        %464 = vmatprep.subr.mxu0 0.0
        %465 = vmatpush1.msra.mxu0 0.0
        %466 = vmatprep.subr.mxu0 0.0
        %467 = vmatpush1.msra.mxu0 0.0
        %468 = vmatprep.subr.mxu0 0.0
        %469 = vmatpush1.msra.mxu0 0.0
        %470 = vmatprep.subr.mxu0 0.0
        %471 = vmatpush1.msra.mxu0 0.0
        %472 = vmatprep.subr.mxu0 0.0
        %473 = vmatpush1.msra.mxu0 0.0
        %474 = vmatprep.subr.mxu0 0.0
        %475 = vmatpush1.msra.mxu0 0.0
        %476 = vmatprep.subr.mxu0 0.0
        %477 = vmatpush1.msra.mxu0 0.0
        %478 = vmatprep.subr.mxu0 0.0
        %479 = vmatpush1.msra.mxu0 0.0
        %480 = vmatprep.subr.mxu0 0.0
        %481 = vmatpush1.msra.mxu0 0.0
        %482 = vmatprep.subr.mxu0 0.0
        %483 = vmatpush1.msra.mxu0 0.0
        %484 = vmatprep.subr.mxu0 0.0
        %485 = vmatpush1.msra.mxu0 0.0
        %486 = vmatprep.subr.mxu0 0.0
        %487 = vmatpush1.msra.mxu0 0.0
        %488 = vmatprep.subr.mxu0 0.0
        %489 = vmatpush1.msra.mxu0 0.0
        %490 = vmatprep.subr.mxu0 0.0
        %491 = vmatpush1.msra.mxu0 0.0
        %492 = vmatprep.subr.mxu0 0.0
        %493 = vmatpush1.msra.mxu0 0.0
        %494 = vmatprep.subr.mxu0 0.0
        %495 = vmatpush1.msra.mxu0 0.0
        %496 = vmatprep.subr.mxu0 0.0
        %497 = vmatpush1.msra.mxu0 0.0
        %498 = vmatprep.subr.mxu0 0.0
        %499 = vmatpush1.msra.mxu0 0.0
        %500 = vmatprep.subr.mxu0 0.0
        %501 = vmatpush1.msra.mxu0 0.0
        %502 = vmatprep.mubr.f32.mxu0 0.0
        %v503 = vand.u32 %v343, 4294901760
        %504 = vmatmul.mubr.f32.gmra.mrb[0].mxu0 %v503
        %v505 = vpop.f32.mrb[0].mxu0
        %v506 = vadd.f32 %v424, %v505
        %v507 = vpop.f32.mrb[0].mxu0
        %v508 = vadd.f32 %v426, %v507
        %509 = vdwg.mxu0
        %v510 = vand.u32 %v348, 4294901760
        %v511 = vsub.f32 %v348, %v510
        %512 = vmatprep.subr.mxu0 %v511
        %v513 = vand.u32 %v346, 4294901760
        %v514 = vsub.f32 %v346, %v513
        %515 = vmatpush1.msra.mxu0 %v514
        %516 = vmatprep.subr.mxu0 0.0
        %517 = vmatpush1.msra.mxu0 0.0
        %518 = vmatprep.subr.mxu0 0.0
        %519 = vmatpush1.msra.mxu0 0.0
        %520 = vmatprep.subr.mxu0 0.0
        %521 = vmatpush1.msra.mxu0 0.0
        %522 = vmatprep.subr.mxu0 0.0
        %523 = vmatpush1.msra.mxu0 0.0
        %524 = vmatprep.subr.mxu0 0.0
        %525 = vmatpush1.msra.mxu0 0.0
        %526 = vmatprep.subr.mxu0 0.0
        %527 = vmatpush1.msra.mxu0 0.0
        %528 = vmatprep.subr.mxu0 0.0
        %529 = vmatpush1.msra.mxu0 0.0
        %530 = vmatprep.subr.mxu0 0.0
        %531 = vmatpush1.msra.mxu0 0.0
        %532 = vmatprep.subr.mxu0 0.0
        %533 = vmatpush1.msra.mxu0 0.0
        %534 = vmatprep.subr.mxu0 0.0
        %535 = vmatpush1.msra.mxu0 0.0
        %536 = vmatprep.subr.mxu0 0.0
        %537 = vmatpush1.msra.mxu0 0.0
        %538 = vmatprep.subr.mxu0 0.0
        %539 = vmatpush1.msra.mxu0 0.0
        %540 = vmatprep.subr.mxu0 0.0
        %541 = vmatpush1.msra.mxu0 0.0
        %542 = vmatprep.subr.mxu0 0.0
        %543 = vmatpush1.msra.mxu0 0.0
        %544 = vmatprep.subr.mxu0 0.0
        %545 = vmatpush1.msra.mxu0 0.0
        %546 = vmatprep.subr.mxu0 0.0
        %547 = vmatpush1.msra.mxu0 0.0
        %548 = vmatprep.subr.mxu0 0.0
        %549 = vmatpush1.msra.mxu0 0.0
        %550 = vmatprep.subr.mxu0 0.0
        %551 = vmatpush1.msra.mxu0 0.0
        %552 = vmatprep.subr.mxu0 0.0
        %553 = vmatpush1.msra.mxu0 0.0
        %554 = vmatprep.subr.mxu0 0.0
        %555 = vmatpush1.msra.mxu0 0.0
        %556 = vmatprep.subr.mxu0 0.0
        %557 = vmatpush1.msra.mxu0 0.0
        %558 = vmatprep.subr.mxu0 0.0
        %559 = vmatpush1.msra.mxu0 0.0
        %560 = vmatprep.subr.mxu0 0.0
        %561 = vmatpush1.msra.mxu0 0.0
        %562 = vmatprep.subr.mxu0 0.0
        %563 = vmatpush1.msra.mxu0 0.0
        %564 = vmatprep.subr.mxu0 0.0
        %565 = vmatpush1.msra.mxu0 0.0
        %566 = vmatprep.subr.mxu0 0.0
        %567 = vmatpush1.msra.mxu0 0.0
        %568 = vmatprep.subr.mxu0 0.0
        %569 = vmatpush1.msra.mxu0 0.0
        %570 = vmatprep.subr.mxu0 0.0
        %571 = vmatpush1.msra.mxu0 0.0
        %572 = vmatprep.subr.mxu0 0.0
        %573 = vmatpush1.msra.mxu0 0.0
        %574 = vmatprep.subr.mxu0 0.0
        %575 = vmatpush1.msra.mxu0 0.0
        %576 = vmatprep.subr.mxu0 0.0
        %577 = vmatpush1.msra.mxu0 0.0
        %578 = vmatprep.mubr.f32.mxu0 0.0
        %v579 = vand.u32 %v343, 4294901760
        %v580 = vsub.f32 %v343, %v579
        %581 = vmatmul.mubr.f32.gmra.mrb[0].mxu0 %v580
        %v582 = vpop.f32.mrb[0].mxu0
        %v583 = vadd.f32 %v506, %v582
        %v584 = vpop.f32.mrb[0].mxu0
        %v585 = vadd.f32 %v508, %v584
        %586 = vdwg.mxu0
        %v587 = vand.u32 %v348, 4294901760
        %588 = vmatprep.subr.mxu0 %v587
        %v589 = vand.u32 %v346, 4294901760
        %590 = vmatpush1.msra.mxu0 %v589
        %591 = vmatprep.subr.mxu0 0.0
        %592 = vmatpush1.msra.mxu0 0.0
        %593 = vmatprep.subr.mxu0 0.0
        %594 = vmatpush1.msra.mxu0 0.0
        %595 = vmatprep.subr.mxu0 0.0
        %596 = vmatpush1.msra.mxu0 0.0
        %597 = vmatprep.subr.mxu0 0.0
        %598 = vmatpush1.msra.mxu0 0.0
        %599 = vmatprep.subr.mxu0 0.0
        %600 = vmatpush1.msra.mxu0 0.0
        %601 = vmatprep.subr.mxu0 0.0
        %602 = vmatpush1.msra.mxu0 0.0
        %603 = vmatprep.subr.mxu0 0.0
        %604 = vmatpush1.msra.mxu0 0.0
        %605 = vmatprep.subr.mxu0 0.0
        %606 = vmatpush1.msra.mxu0 0.0
        %607 = vmatprep.subr.mxu0 0.0
        %608 = vmatpush1.msra.mxu0 0.0
        %609 = vmatprep.subr.mxu0 0.0
        %610 = vmatpush1.msra.mxu0 0.0
        %611 = vmatprep.subr.mxu0 0.0
        %612 = vmatpush1.msra.mxu0 0.0
        %613 = vmatprep.subr.mxu0 0.0
        %614 = vmatpush1.msra.mxu0 0.0
        %615 = vmatprep.subr.mxu0 0.0
        %616 = vmatpush1.msra.mxu0 0.0
        %617 = vmatprep.subr.mxu0 0.0
        %618 = vmatpush1.msra.mxu0 0.0
        %619 = vmatprep.subr.mxu0 0.0
        %620 = vmatpush1.msra.mxu0 0.0
        %621 = vmatprep.subr.mxu0 0.0
        %622 = vmatpush1.msra.mxu0 0.0
        %623 = vmatprep.subr.mxu0 0.0
        %624 = vmatpush1.msra.mxu0 0.0
        %625 = vmatprep.subr.mxu0 0.0
        %626 = vmatpush1.msra.mxu0 0.0
        %627 = vmatprep.subr.mxu0 0.0
        %628 = vmatpush1.msra.mxu0 0.0
        %629 = vmatprep.subr.mxu0 0.0
        %630 = vmatpush1.msra.mxu0 0.0
        %631 = vmatprep.subr.mxu0 0.0
        %632 = vmatpush1.msra.mxu0 0.0
        %633 = vmatprep.subr.mxu0 0.0
        %634 = vmatpush1.msra.mxu0 0.0
        %635 = vmatprep.subr.mxu0 0.0
        %636 = vmatpush1.msra.mxu0 0.0
        %637 = vmatprep.subr.mxu0 0.0
        %638 = vmatpush1.msra.mxu0 0.0
        %639 = vmatprep.subr.mxu0 0.0
        %640 = vmatpush1.msra.mxu0 0.0
        %641 = vmatprep.subr.mxu0 0.0
        %642 = vmatpush1.msra.mxu0 0.0
        %643 = vmatprep.subr.mxu0 0.0
        %644 = vmatpush1.msra.mxu0 0.0
        %645 = vmatprep.subr.mxu0 0.0
        %646 = vmatpush1.msra.mxu0 0.0
        %647 = vmatprep.subr.mxu0 0.0
        %648 = vmatpush1.msra.mxu0 0.0
        %649 = vmatprep.subr.mxu0 0.0
        %650 = vmatpush1.msra.mxu0 0.0
        %651 = vmatprep.subr.mxu0 0.0
        %652 = vmatpush1.msra.mxu0 0.0
        %653 = vmatprep.mubr.f32.mxu0 0.0
        %v654 = vand.u32 %v343, 4294901760
        %v655 = vsub.f32 %v343, %v654
        %v656 = vand.u32 %v655, 4294901760
        %657 = vmatmul.mubr.f32.gmra.mrb[0].mxu0 %v656
        %v658 = vpop.f32.mrb[0].mxu0
        %v659 = vadd.f32 %v583, %v658
        %v660 = vpop.f32.mrb[0].mxu0
        %v661 = vadd.f32 %v585, %v660
        %662 = vdwg.mxu0
        %v663 = vand.u32 %v348, 4294901760
        %v664 = vsub.f32 %v348, %v663
        %v665 = vand.u32 %v664, 4294901760
        %666 = vmatprep.subr.mxu0 %v665
        %v667 = vand.u32 %v346, 4294901760
        %v668 = vsub.f32 %v346, %v667
        %v669 = vand.u32 %v668, 4294901760
        %670 = vmatpush1.msra.mxu0 %v669
        %671 = vmatprep.subr.mxu0 0.0
        %672 = vmatpush1.msra.mxu0 0.0
        %673 = vmatprep.subr.mxu0 0.0
        %674 = vmatpush1.msra.mxu0 0.0
        %675 = vmatprep.subr.mxu0 0.0
        %676 = vmatpush1.msra.mxu0 0.0
        %677 = vmatprep.subr.mxu0 0.0
        %678 = vmatpush1.msra.mxu0 0.0
        %679 = vmatprep.subr.mxu0 0.0
        %680 = vmatpush1.msra.mxu0 0.0
        %681 = vmatprep.subr.mxu0 0.0
        %682 = vmatpush1.msra.mxu0 0.0
        %683 = vmatprep.subr.mxu0 0.0
        %684 = vmatpush1.msra.mxu0 0.0
        %685 = vmatprep.subr.mxu0 0.0
        %686 = vmatpush1.msra.mxu0 0.0
        %687 = vmatprep.subr.mxu0 0.0
        %688 = vmatpush1.msra.mxu0 0.0
        %689 = vmatprep.subr.mxu0 0.0
        %690 = vmatpush1.msra.mxu0 0.0
        %691 = vmatprep.subr.mxu0 0.0
        %692 = vmatpush1.msra.mxu0 0.0
        %693 = vmatprep.subr.mxu0 0.0
        %694 = vmatpush1.msra.mxu0 0.0
        %695 = vmatprep.subr.mxu0 0.0
        %696 = vmatpush1.msra.mxu0 0.0
        %697 = vmatprep.subr.mxu0 0.0
        %698 = vmatpush1.msra.mxu0 0.0
        %699 = vmatprep.subr.mxu0 0.0
        %700 = vmatpush1.msra.mxu0 0.0
        %701 = vmatprep.subr.mxu0 0.0
        %702 = vmatpush1.msra.mxu0 0.0
        %703 = vmatprep.subr.mxu0 0.0
        %704 = vmatpush1.msra.mxu0 0.0
        %705 = vmatprep.subr.mxu0 0.0
        %706 = vmatpush1.msra.mxu0 0.0
        %707 = vmatprep.subr.mxu0 0.0
        %708 = vmatpush1.msra.mxu0 0.0
        %709 = vmatprep.subr.mxu0 0.0
        %710 = vmatpush1.msra.mxu0 0.0
        %711 = vmatprep.subr.mxu0 0.0
        %712 = vmatpush1.msra.mxu0 0.0
        %713 = vmatprep.subr.mxu0 0.0
        %714 = vmatpush1.msra.mxu0 0.0
        %715 = vmatprep.subr.mxu0 0.0
        %716 = vmatpush1.msra.mxu0 0.0
        %717 = vmatprep.subr.mxu0 0.0
        %718 = vmatpush1.msra.mxu0 0.0
        %719 = vmatprep.subr.mxu0 0.0
        %720 = vmatpush1.msra.mxu0 0.0
        %721 = vmatprep.subr.mxu0 0.0
        %722 = vmatpush1.msra.mxu0 0.0
        %723 = vmatprep.subr.mxu0 0.0
        %724 = vmatpush1.msra.mxu0 0.0
        %725 = vmatprep.subr.mxu0 0.0
        %726 = vmatpush1.msra.mxu0 0.0
        %727 = vmatprep.subr.mxu0 0.0
        %728 = vmatpush1.msra.mxu0 0.0
        %729 = vmatprep.subr.mxu0 0.0
        %730 = vmatpush1.msra.mxu0 0.0
        %731 = vmatprep.subr.mxu0 0.0
        %732 = vmatpush1.msra.mxu0 0.0
        %733 = vmatprep.mubr.f32.mxu0 0.0
        %v734 = vand.u32 %v343, 4294901760
        %735 = vmatmul.mubr.f32.gmra.mrb[0].mxu0 %v734
        %v736 = vpop.f32.mrb[0].mxu0
        %v737 = vadd.f32 %v659, %v736
        %v738 = vpop.f32.mrb[0].mxu0
        %v739 = vadd.f32 %v661, %v738
        %740 = vdwg.mxu0
        %v741 = vand.u32 %v348, 4294901760
        %742 = vmatprep.subr.mxu0 %v741
        %v743 = vand.u32 %v346, 4294901760
        %744 = vmatpush1.msra.mxu0 %v743
        %745 = vmatprep.subr.mxu0 0.0
        %746 = vmatpush1.msra.mxu0 0.0
        %747 = vmatprep.subr.mxu0 0.0
        %748 = vmatpush1.msra.mxu0 0.0
        %749 = vmatprep.subr.mxu0 0.0
        %750 = vmatpush1.msra.mxu0 0.0
        %751 = vmatprep.subr.mxu0 0.0
        %752 = vmatpush1.msra.mxu0 0.0
        %753 = vmatprep.subr.mxu0 0.0
        %754 = vmatpush1.msra.mxu0 0.0
        %755 = vmatprep.subr.mxu0 0.0
        %756 = vmatpush1.msra.mxu0 0.0
        %757 = vmatprep.subr.mxu0 0.0
        %758 = vmatpush1.msra.mxu0 0.0
        %759 = vmatprep.subr.mxu0 0.0
        %760 = vmatpush1.msra.mxu0 0.0
        %761 = vmatprep.subr.mxu0 0.0
        %762 = vmatpush1.msra.mxu0 0.0
        %763 = vmatprep.subr.mxu0 0.0
        %764 = vmatpush1.msra.mxu0 0.0
        %765 = vmatprep.subr.mxu0 0.0
        %766 = vmatpush1.msra.mxu0 0.0
        %767 = vmatprep.subr.mxu0 0.0
        %768 = vmatpush1.msra.mxu0 0.0
        %769 = vmatprep.subr.mxu0 0.0
        %770 = vmatpush1.msra.mxu0 0.0
        %771 = vmatprep.subr.mxu0 0.0
        %772 = vmatpush1.msra.mxu0 0.0
        %773 = vmatprep.subr.mxu0 0.0
        %774 = vmatpush1.msra.mxu0 0.0
        %775 = vmatprep.subr.mxu0 0.0
        %776 = vmatpush1.msra.mxu0 0.0
        %777 = vmatprep.subr.mxu0 0.0
        %778 = vmatpush1.msra.mxu0 0.0
        %779 = vmatprep.subr.mxu0 0.0
        %780 = vmatpush1.msra.mxu0 0.0
        %781 = vmatprep.subr.mxu0 0.0
        %782 = vmatpush1.msra.mxu0 0.0
        %783 = vmatprep.subr.mxu0 0.0
        %784 = vmatpush1.msra.mxu0 0.0
        %785 = vmatprep.subr.mxu0 0.0
        %786 = vmatpush1.msra.mxu0 0.0
        %787 = vmatprep.subr.mxu0 0.0
        %788 = vmatpush1.msra.mxu0 0.0
        %789 = vmatprep.subr.mxu0 0.0
        %790 = vmatpush1.msra.mxu0 0.0
        %791 = vmatprep.subr.mxu0 0.0
        %792 = vmatpush1.msra.mxu0 0.0
        %793 = vmatprep.subr.mxu0 0.0
        %794 = vmatpush1.msra.mxu0 0.0
        %795 = vmatprep.subr.mxu0 0.0
        %796 = vmatpush1.msra.mxu0 0.0
        %797 = vmatprep.subr.mxu0 0.0
        %798 = vmatpush1.msra.mxu0 0.0
        %799 = vmatprep.subr.mxu0 0.0
        %800 = vmatpush1.msra.mxu0 0.0
        %801 = vmatprep.subr.mxu0 0.0
        %802 = vmatpush1.msra.mxu0 0.0
        %803 = vmatprep.subr.mxu0 0.0
        %804 = vmatpush1.msra.mxu0 0.0
        %805 = vmatprep.subr.mxu0 0.0
        %806 = vmatpush1.msra.mxu0 0.0
        %807 = vmatprep.mubr.f32.mxu0 0.0
        %v808 = vand.u32 %v343, 4294901760
        %809 = vmatmul.mubr.f32.gmra.mrb[0].mxu0 %v808
        %v810 = vpop.f32.mrb[0].mxu0
        %v811 = vadd.f32 %v737, %v810
        %v812 = vpop.f32.mrb[0].mxu0
        %v813 = vadd.f32 %v739, %v812
        %814 = vdwg.mxu0
        %v815 = vmax.f32 %v811, 0.0
        %v816 = vmax.f32 %v813, 0.0
        %v817 = vld [vmem:[%s4] sm:$0xf]
        %v818 = vld [vmem:[%s5] sm:$0xf]
        %820 = vset.pattern.permute.xlu0 0
        %821 = vperm.xlu0 %820, %v818
        %v822 = vpop.permute.xlu0 %821
        %v825 = vsel %vm341, %v817, 0
        %v828 = vsel %vm345, %v815, 0
        %v831 = vsel %vm345, %v816, 0
        %v833 = vand.u32 %v831, 4294901760
        %834 = vmatprep.subr.mxu0 %v833
        %v835 = vand.u32 %v828, 4294901760
        %836 = vmatpush1.msra.mxu0 %v835
        %837 = vmatprep.subr.mxu0 0.0
        %838 = vmatpush1.msra.mxu0 0.0
        %839 = vmatprep.subr.mxu0 0.0
        %840 = vmatpush1.msra.mxu0 0.0
        %841 = vmatprep.subr.mxu0 0.0
        %842 = vmatpush1.msra.mxu0 0.0
        %843 = vmatprep.subr.mxu0 0.0
        %844 = vmatpush1.msra.mxu0 0.0
        %845 = vmatprep.subr.mxu0 0.0
        %846 = vmatpush1.msra.mxu0 0.0
        %847 = vmatprep.subr.mxu0 0.0
        %848 = vmatpush1.msra.mxu0 0.0
        %849 = vmatprep.subr.mxu0 0.0
        %850 = vmatpush1.msra.mxu0 0.0
        %851 = vmatprep.subr.mxu0 0.0
        %852 = vmatpush1.msra.mxu0 0.0
        %853 = vmatprep.subr.mxu0 0.0
        %854 = vmatpush1.msra.mxu0 0.0
        %855 = vmatprep.subr.mxu0 0.0
        %856 = vmatpush1.msra.mxu0 0.0
        %857 = vmatprep.subr.mxu0 0.0
        %858 = vmatpush1.msra.mxu0 0.0
        %859 = vmatprep.subr.mxu0 0.0
        %860 = vmatpush1.msra.mxu0 0.0
        %861 = vmatprep.subr.mxu0 0.0
        %862 = vmatpush1.msra.mxu0 0.0
        %863 = vmatprep.subr.mxu0 0.0
        %864 = vmatpush1.msra.mxu0 0.0
        %865 = vmatprep.subr.mxu0 0.0
        %866 = vmatpush1.msra.mxu0 0.0
        %867 = vmatprep.subr.mxu0 0.0
        %868 = vmatpush1.msra.mxu0 0.0
        %869 = vmatprep.subr.mxu0 0.0
        %870 = vmatpush1.msra.mxu0 0.0
        %871 = vmatprep.subr.mxu0 0.0
        %872 = vmatpush1.msra.mxu0 0.0
        %873 = vmatprep.subr.mxu0 0.0
        %874 = vmatpush1.msra.mxu0 0.0
        %875 = vmatprep.subr.mxu0 0.0
        %876 = vmatpush1.msra.mxu0 0.0
        %877 = vmatprep.subr.mxu0 0.0
        %878 = vmatpush1.msra.mxu0 0.0
        %879 = vmatprep.subr.mxu0 0.0
        %880 = vmatpush1.msra.mxu0 0.0
        %881 = vmatprep.subr.mxu0 0.0
        %882 = vmatpush1.msra.mxu0 0.0
        %883 = vmatprep.subr.mxu0 0.0
        %884 = vmatpush1.msra.mxu0 0.0
        %885 = vmatprep.subr.mxu0 0.0
        %886 = vmatpush1.msra.mxu0 0.0
        %887 = vmatprep.subr.mxu0 0.0
        %888 = vmatpush1.msra.mxu0 0.0
        %889 = vmatprep.subr.mxu0 0.0
        %890 = vmatpush1.msra.mxu0 0.0
        %891 = vmatprep.subr.mxu0 0.0
        %892 = vmatpush1.msra.mxu0 0.0
        %893 = vmatprep.subr.mxu0 0.0
        %894 = vmatpush1.msra.mxu0 0.0
        %895 = vmatprep.subr.mxu0 0.0
        %896 = vmatpush1.msra.mxu0 0.0
        %897 = vmatprep.subr.mxu0 0.0
        %898 = vmatpush1.msra.mxu0 0.0
        %899 = vmatprep.mubr.f32.mxu0 0.0
        %v900 = vand.u32 %v825, 4294901760
        %v901 = vsub.f32 %v825, %v900
        %v902 = vand.u32 %v901, 4294901760
        %v903 = vsub.f32 %v901, %v902
        %v904 = vand.u32 %v903, 4294901760
        %905 = vmatmul.mubr.f32.gmra.mrb[0].mxu0 %v904
        %v906 = vpop.f32.mrb[0].mxu0
        %v907 = vadd.f32 %v822, %v906
        %v908 = vpop.f32.mrb[0].mxu0
        %v909 = vadd.f32 %v822, %v908
        %910 = vdwg.mxu0
        %v911 = vand.u32 %v831, 4294901760
        %v912 = vsub.f32 %v831, %v911
        %v913 = vand.u32 %v912, 4294901760
        %v914 = vsub.f32 %v912, %v913
        %v915 = vand.u32 %v914, 4294901760
        %916 = vmatprep.subr.mxu0 %v915
        %v917 = vand.u32 %v828, 4294901760
        %v918 = vsub.f32 %v828, %v917
        %v919 = vand.u32 %v918, 4294901760
        %v920 = vsub.f32 %v918, %v919
        %v921 = vand.u32 %v920, 4294901760
        %922 = vmatpush1.msra.mxu0 %v921
        %923 = vmatprep.subr.mxu0 0.0
        %924 = vmatpush1.msra.mxu0 0.0
        %925 = vmatprep.subr.mxu0 0.0
        %926 = vmatpush1.msra.mxu0 0.0
        %927 = vmatprep.subr.mxu0 0.0
        %928 = vmatpush1.msra.mxu0 0.0
        %929 = vmatprep.subr.mxu0 0.0
        %930 = vmatpush1.msra.mxu0 0.0
        %931 = vmatprep.subr.mxu0 0.0
        %932 = vmatpush1.msra.mxu0 0.0
        %933 = vmatprep.subr.mxu0 0.0
        %934 = vmatpush1.msra.mxu0 0.0
        %935 = vmatprep.subr.mxu0 0.0
        %936 = vmatpush1.msra.mxu0 0.0
        %937 = vmatprep.subr.mxu0 0.0
        %938 = vmatpush1.msra.mxu0 0.0
        %939 = vmatprep.subr.mxu0 0.0
        %940 = vmatpush1.msra.mxu0 0.0
        %941 = vmatprep.subr.mxu0 0.0
        %942 = vmatpush1.msra.mxu0 0.0
        %943 = vmatprep.subr.mxu0 0.0
        %944 = vmatpush1.msra.mxu0 0.0
        %945 = vmatprep.subr.mxu0 0.0
        %946 = vmatpush1.msra.mxu0 0.0
        %947 = vmatprep.subr.mxu0 0.0
        %948 = vmatpush1.msra.mxu0 0.0
        %949 = vmatprep.subr.mxu0 0.0
        %950 = vmatpush1.msra.mxu0 0.0
        %951 = vmatprep.subr.mxu0 0.0
        %952 = vmatpush1.msra.mxu0 0.0
        %953 = vmatprep.subr.mxu0 0.0
        %954 = vmatpush1.msra.mxu0 0.0
        %955 = vmatprep.subr.mxu0 0.0
        %956 = vmatpush1.msra.mxu0 0.0
        %957 = vmatprep.subr.mxu0 0.0
        %958 = vmatpush1.msra.mxu0 0.0
        %959 = vmatprep.subr.mxu0 0.0
        %960 = vmatpush1.msra.mxu0 0.0
        %961 = vmatprep.subr.mxu0 0.0
        %962 = vmatpush1.msra.mxu0 0.0
        %963 = vmatprep.subr.mxu0 0.0
        %964 = vmatpush1.msra.mxu0 0.0
        %965 = vmatprep.subr.mxu0 0.0
        %966 = vmatpush1.msra.mxu0 0.0
        %967 = vmatprep.subr.mxu0 0.0
        %968 = vmatpush1.msra.mxu0 0.0
        %969 = vmatprep.subr.mxu0 0.0
        %970 = vmatpush1.msra.mxu0 0.0
        %971 = vmatprep.subr.mxu0 0.0
        %972 = vmatpush1.msra.mxu0 0.0
        %973 = vmatprep.subr.mxu0 0.0
        %974 = vmatpush1.msra.mxu0 0.0
        %975 = vmatprep.subr.mxu0 0.0
        %976 = vmatpush1.msra.mxu0 0.0
        %977 = vmatprep.subr.mxu0 0.0
        %978 = vmatpush1.msra.mxu0 0.0
        %979 = vmatprep.subr.mxu0 0.0
        %980 = vmatpush1.msra.mxu0 0.0
        %981 = vmatprep.subr.mxu0 0.0
        %982 = vmatpush1.msra.mxu0 0.0
        %983 = vmatprep.subr.mxu0 0.0
        %984 = vmatpush1.msra.mxu0 0.0
        %985 = vmatprep.mubr.f32.mxu0 0.0
        %v986 = vand.u32 %v825, 4294901760
        %987 = vmatmul.mubr.f32.gmra.mrb[0].mxu0 %v986
        %v988 = vpop.f32.mrb[0].mxu0
        %v989 = vadd.f32 %v907, %v988
        %v990 = vpop.f32.mrb[0].mxu0
        %v991 = vadd.f32 %v909, %v990
        %992 = vdwg.mxu0
        %v993 = vand.u32 %v831, 4294901760
        %v994 = vsub.f32 %v831, %v993
        %995 = vmatprep.subr.mxu0 %v994
        %v996 = vand.u32 %v828, 4294901760
        %v997 = vsub.f32 %v828, %v996
        %998 = vmatpush1.msra.mxu0 %v997
        %999 = vmatprep.subr.mxu0 0.0
        %1000 = vmatpush1.msra.mxu0 0.0
        %1001 = vmatprep.subr.mxu0 0.0
        %1002 = vmatpush1.msra.mxu0 0.0
        %1003 = vmatprep.subr.mxu0 0.0
        %1004 = vmatpush1.msra.mxu0 0.0
        %1005 = vmatprep.subr.mxu0 0.0
        %1006 = vmatpush1.msra.mxu0 0.0
        %1007 = vmatprep.subr.mxu0 0.0
        %1008 = vmatpush1.msra.mxu0 0.0
        %1009 = vmatprep.subr.mxu0 0.0
        %1010 = vmatpush1.msra.mxu0 0.0
        %1011 = vmatprep.subr.mxu0 0.0
        %1012 = vmatpush1.msra.mxu0 0.0
        %1013 = vmatprep.subr.mxu0 0.0
        %1014 = vmatpush1.msra.mxu0 0.0
        %1015 = vmatprep.subr.mxu0 0.0
        %1016 = vmatpush1.msra.mxu0 0.0
        %1017 = vmatprep.subr.mxu0 0.0
        %1018 = vmatpush1.msra.mxu0 0.0
        %1019 = vmatprep.subr.mxu0 0.0
        %1020 = vmatpush1.msra.mxu0 0.0
        %1021 = vmatprep.subr.mxu0 0.0
        %1022 = vmatpush1.msra.mxu0 0.0
        %1023 = vmatprep.subr.mxu0 0.0
        %1024 = vmatpush1.msra.mxu0 0.0
        %1025 = vmatprep.subr.mxu0 0.0
        %1026 = vmatpush1.msra.mxu0 0.0
        %1027 = vmatprep.subr.mxu0 0.0
        %1028 = vmatpush1.msra.mxu0 0.0
        %1029 = vmatprep.subr.mxu0 0.0
        %1030 = vmatpush1.msra.mxu0 0.0
        %1031 = vmatprep.subr.mxu0 0.0
        %1032 = vmatpush1.msra.mxu0 0.0
        %1033 = vmatprep.subr.mxu0 0.0
        %1034 = vmatpush1.msra.mxu0 0.0
        %1035 = vmatprep.subr.mxu0 0.0
        %1036 = vmatpush1.msra.mxu0 0.0
        %1037 = vmatprep.subr.mxu0 0.0
        %1038 = vmatpush1.msra.mxu0 0.0
        %1039 = vmatprep.subr.mxu0 0.0
        %1040 = vmatpush1.msra.mxu0 0.0
        %1041 = vmatprep.subr.mxu0 0.0
        %1042 = vmatpush1.msra.mxu0 0.0
        %1043 = vmatprep.subr.mxu0 0.0
        %1044 = vmatpush1.msra.mxu0 0.0
        %1045 = vmatprep.subr.mxu0 0.0
        %1046 = vmatpush1.msra.mxu0 0.0
        %1047 = vmatprep.subr.mxu0 0.0
        %1048 = vmatpush1.msra.mxu0 0.0
        %1049 = vmatprep.subr.mxu0 0.0
        %1050 = vmatpush1.msra.mxu0 0.0
        %1051 = vmatprep.subr.mxu0 0.0
        %1052 = vmatpush1.msra.mxu0 0.0
        %1053 = vmatprep.subr.mxu0 0.0
        %1054 = vmatpush1.msra.mxu0 0.0
        %1055 = vmatprep.subr.mxu0 0.0
        %1056 = vmatpush1.msra.mxu0 0.0
        %1057 = vmatprep.subr.mxu0 0.0
        %1058 = vmatpush1.msra.mxu0 0.0
        %1059 = vmatprep.subr.mxu0 0.0
        %1060 = vmatpush1.msra.mxu0 0.0
        %1061 = vmatprep.mubr.f32.mxu0 0.0
        %v1062 = vand.u32 %v825, 4294901760
        %v1063 = vsub.f32 %v825, %v1062
        %1064 = vmatmul.mubr.f32.gmra.mrb[0].mxu0 %v1063
        %v1065 = vpop.f32.mrb[0].mxu0
        %v1066 = vadd.f32 %v989, %v1065
        %v1067 = vpop.f32.mrb[0].mxu0
        %v1068 = vadd.f32 %v991, %v1067
        %1069 = vdwg.mxu0
        %v1070 = vand.u32 %v831, 4294901760
        %1071 = vmatprep.subr.mxu0 %v1070
        %v1072 = vand.u32 %v828, 4294901760
        %1073 = vmatpush1.msra.mxu0 %v1072
        %1074 = vmatprep.subr.mxu0 0.0
        %1075 = vmatpush1.msra.mxu0 0.0
        %1076 = vmatprep.subr.mxu0 0.0
        %1077 = vmatpush1.msra.mxu0 0.0
        %1078 = vmatprep.subr.mxu0 0.0
        %1079 = vmatpush1.msra.mxu0 0.0
        %1080 = vmatprep.subr.mxu0 0.0
        %1081 = vmatpush1.msra.mxu0 0.0
        %1082 = vmatprep.subr.mxu0 0.0
        %1083 = vmatpush1.msra.mxu0 0.0
        %1084 = vmatprep.subr.mxu0 0.0
        %1085 = vmatpush1.msra.mxu0 0.0
        %1086 = vmatprep.subr.mxu0 0.0
        %1087 = vmatpush1.msra.mxu0 0.0
        %1088 = vmatprep.subr.mxu0 0.0
        %1089 = vmatpush1.msra.mxu0 0.0
        %1090 = vmatprep.subr.mxu0 0.0
        %1091 = vmatpush1.msra.mxu0 0.0
        %1092 = vmatprep.subr.mxu0 0.0
        %1093 = vmatpush1.msra.mxu0 0.0
        %1094 = vmatprep.subr.mxu0 0.0
        %1095 = vmatpush1.msra.mxu0 0.0
        %1096 = vmatprep.subr.mxu0 0.0
        %1097 = vmatpush1.msra.mxu0 0.0
        %1098 = vmatprep.subr.mxu0 0.0
        %1099 = vmatpush1.msra.mxu0 0.0
        %1100 = vmatprep.subr.mxu0 0.0
        %1101 = vmatpush1.msra.mxu0 0.0
        %1102 = vmatprep.subr.mxu0 0.0
        %1103 = vmatpush1.msra.mxu0 0.0
        %1104 = vmatprep.subr.mxu0 0.0
        %1105 = vmatpush1.msra.mxu0 0.0
        %1106 = vmatprep.subr.mxu0 0.0
        %1107 = vmatpush1.msra.mxu0 0.0
        %1108 = vmatprep.subr.mxu0 0.0
        %1109 = vmatpush1.msra.mxu0 0.0
        %1110 = vmatprep.subr.mxu0 0.0
        %1111 = vmatpush1.msra.mxu0 0.0
        %1112 = vmatprep.subr.mxu0 0.0
        %1113 = vmatpush1.msra.mxu0 0.0
        %1114 = vmatprep.subr.mxu0 0.0
        %1115 = vmatpush1.msra.mxu0 0.0
        %1116 = vmatprep.subr.mxu0 0.0
        %1117 = vmatpush1.msra.mxu0 0.0
        %1118 = vmatprep.subr.mxu0 0.0
        %1119 = vmatpush1.msra.mxu0 0.0
        %1120 = vmatprep.subr.mxu0 0.0
        %1121 = vmatpush1.msra.mxu0 0.0
        %1122 = vmatprep.subr.mxu0 0.0
        %1123 = vmatpush1.msra.mxu0 0.0
        %1124 = vmatprep.subr.mxu0 0.0
        %1125 = vmatpush1.msra.mxu0 0.0
        %1126 = vmatprep.subr.mxu0 0.0
        %1127 = vmatpush1.msra.mxu0 0.0
        %1128 = vmatprep.subr.mxu0 0.0
        %1129 = vmatpush1.msra.mxu0 0.0
        %1130 = vmatprep.subr.mxu0 0.0
        %1131 = vmatpush1.msra.mxu0 0.0
        %1132 = vmatprep.subr.mxu0 0.0
        %1133 = vmatpush1.msra.mxu0 0.0
        %1134 = vmatprep.subr.mxu0 0.0
        %1135 = vmatpush1.msra.mxu0 0.0
        %1136 = vmatprep.mubr.f32.mxu0 0.0
        %v1137 = vand.u32 %v825, 4294901760
        %v1138 = vsub.f32 %v825, %v1137
        %v1139 = vand.u32 %v1138, 4294901760
        %1140 = vmatmul.mubr.f32.gmra.mrb[0].mxu0 %v1139
        %v1141 = vpop.f32.mrb[0].mxu0
        %v1142 = vadd.f32 %v1066, %v1141
        %v1143 = vpop.f32.mrb[0].mxu0
        %v1144 = vadd.f32 %v1068, %v1143
        %1145 = vdwg.mxu0
        %v1146 = vand.u32 %v831, 4294901760
        %v1147 = vsub.f32 %v831, %v1146
        %v1148 = vand.u32 %v1147, 4294901760
        %1149 = vmatprep.subr.mxu0 %v1148
        %v1150 = vand.u32 %v828, 4294901760
        %v1151 = vsub.f32 %v828, %v1150
        %v1152 = vand.u32 %v1151, 4294901760
        %1153 = vmatpush1.msra.mxu0 %v1152
        %1154 = vmatprep.subr.mxu0 0.0
        %1155 = vmatpush1.msra.mxu0 0.0
        %1156 = vmatprep.subr.mxu0 0.0
        %1157 = vmatpush1.msra.mxu0 0.0
        %1158 = vmatprep.subr.mxu0 0.0
        %1159 = vmatpush1.msra.mxu0 0.0
        %1160 = vmatprep.subr.mxu0 0.0
        %1161 = vmatpush1.msra.mxu0 0.0
        %1162 = vmatprep.subr.mxu0 0.0
        %1163 = vmatpush1.msra.mxu0 0.0
        %1164 = vmatprep.subr.mxu0 0.0
        %1165 = vmatpush1.msra.mxu0 0.0
        %1166 = vmatprep.subr.mxu0 0.0
        %1167 = vmatpush1.msra.mxu0 0.0
        %1168 = vmatprep.subr.mxu0 0.0
        %1169 = vmatpush1.msra.mxu0 0.0
        %1170 = vmatprep.subr.mxu0 0.0
        %1171 = vmatpush1.msra.mxu0 0.0
        %1172 = vmatprep.subr.mxu0 0.0
        %1173 = vmatpush1.msra.mxu0 0.0
        %1174 = vmatprep.subr.mxu0 0.0
        %1175 = vmatpush1.msra.mxu0 0.0
        %1176 = vmatprep.subr.mxu0 0.0
        %1177 = vmatpush1.msra.mxu0 0.0
        %1178 = vmatprep.subr.mxu0 0.0
        %1179 = vmatpush1.msra.mxu0 0.0
        %1180 = vmatprep.subr.mxu0 0.0
        %1181 = vmatpush1.msra.mxu0 0.0
        %1182 = vmatprep.subr.mxu0 0.0
        %1183 = vmatpush1.msra.mxu0 0.0
        %1184 = vmatprep.subr.mxu0 0.0
        %1185 = vmatpush1.msra.mxu0 0.0
        %1186 = vmatprep.subr.mxu0 0.0
        %1187 = vmatpush1.msra.mxu0 0.0
        %1188 = vmatprep.subr.mxu0 0.0
        %1189 = vmatpush1.msra.mxu0 0.0
        %1190 = vmatprep.subr.mxu0 0.0
        %1191 = vmatpush1.msra.mxu0 0.0
        %1192 = vmatprep.subr.mxu0 0.0
        %1193 = vmatpush1.msra.mxu0 0.0
        %1194 = vmatprep.subr.mxu0 0.0
        %1195 = vmatpush1.msra.mxu0 0.0
        %1196 = vmatprep.subr.mxu0 0.0
        %1197 = vmatpush1.msra.mxu0 0.0
        %1198 = vmatprep.subr.mxu0 0.0
        %1199 = vmatpush1.msra.mxu0 0.0
        %1200 = vmatprep.subr.mxu0 0.0
        %1201 = vmatpush1.msra.mxu0 0.0
        %1202 = vmatprep.subr.mxu0 0.0
        %1203 = vmatpush1.msra.mxu0 0.0
        %1204 = vmatprep.subr.mxu0 0.0
        %1205 = vmatpush1.msra.mxu0 0.0
        %1206 = vmatprep.subr.mxu0 0.0
        %1207 = vmatpush1.msra.mxu0 0.0
        %1208 = vmatprep.subr.mxu0 0.0
        %1209 = vmatpush1.msra.mxu0 0.0
        %1210 = vmatprep.subr.mxu0 0.0
        %1211 = vmatpush1.msra.mxu0 0.0
        %1212 = vmatprep.subr.mxu0 0.0
        %1213 = vmatpush1.msra.mxu0 0.0
        %1214 = vmatprep.subr.mxu0 0.0
        %1215 = vmatpush1.msra.mxu0 0.0
        %1216 = vmatprep.mubr.f32.mxu0 0.0
        %v1217 = vand.u32 %v825, 4294901760
        %1218 = vmatmul.mubr.f32.gmra.mrb[0].mxu0 %v1217
        %v1219 = vpop.f32.mrb[0].mxu0
        %v1220 = vadd.f32 %v1142, %v1219
        %v1221 = vpop.f32.mrb[0].mxu0
        %v1222 = vadd.f32 %v1144, %v1221
        %1223 = vdwg.mxu0
        %v1224 = vand.u32 %v831, 4294901760
        %1225 = vmatprep.subr.mxu0 %v1224
        %v1226 = vand.u32 %v828, 4294901760
        %1227 = vmatpush1.msra.mxu0 %v1226
        %1228 = vmatprep.subr.mxu0 0.0
        %1229 = vmatpush1.msra.mxu0 0.0
        %1230 = vmatprep.subr.mxu0 0.0
        %1231 = vmatpush1.msra.mxu0 0.0
        %1232 = vmatprep.subr.mxu0 0.0
        %1233 = vmatpush1.msra.mxu0 0.0
        %1234 = vmatprep.subr.mxu0 0.0
        %1235 = vmatpush1.msra.mxu0 0.0
        %1236 = vmatprep.subr.mxu0 0.0
        %1237 = vmatpush1.msra.mxu0 0.0
        %1238 = vmatprep.subr.mxu0 0.0
        %1239 = vmatpush1.msra.mxu0 0.0
        %1240 = vmatprep.subr.mxu0 0.0
        %1241 = vmatpush1.msra.mxu0 0.0
        %1242 = vmatprep.subr.mxu0 0.0
        %1243 = vmatpush1.msra.mxu0 0.0
        %1244 = vmatprep.subr.mxu0 0.0
        %1245 = vmatpush1.msra.mxu0 0.0
        %1246 = vmatprep.subr.mxu0 0.0
        %1247 = vmatpush1.msra.mxu0 0.0
        %1248 = vmatprep.subr.mxu0 0.0
        %1249 = vmatpush1.msra.mxu0 0.0
        %1250 = vmatprep.subr.mxu0 0.0
        %1251 = vmatpush1.msra.mxu0 0.0
        %1252 = vmatprep.subr.mxu0 0.0
        %1253 = vmatpush1.msra.mxu0 0.0
        %1254 = vmatprep.subr.mxu0 0.0
        %1255 = vmatpush1.msra.mxu0 0.0
        %1256 = vmatprep.subr.mxu0 0.0
        %1257 = vmatpush1.msra.mxu0 0.0
        %1258 = vmatprep.subr.mxu0 0.0
        %1259 = vmatpush1.msra.mxu0 0.0
        %1260 = vmatprep.subr.mxu0 0.0
        %1261 = vmatpush1.msra.mxu0 0.0
        %1262 = vmatprep.subr.mxu0 0.0
        %1263 = vmatpush1.msra.mxu0 0.0
        %1264 = vmatprep.subr.mxu0 0.0
        %1265 = vmatpush1.msra.mxu0 0.0
        %1266 = vmatprep.subr.mxu0 0.0
        %1267 = vmatpush1.msra.mxu0 0.0
        %1268 = vmatprep.subr.mxu0 0.0
        %1269 = vmatpush1.msra.mxu0 0.0
        %1270 = vmatprep.subr.mxu0 0.0
        %1271 = vmatpush1.msra.mxu0 0.0
        %1272 = vmatprep.subr.mxu0 0.0
        %1273 = vmatpush1.msra.mxu0 0.0
        %1274 = vmatprep.subr.mxu0 0.0
        %1275 = vmatpush1.msra.mxu0 0.0
        %1276 = vmatprep.subr.mxu0 0.0
        %1277 = vmatpush1.msra.mxu0 0.0
        %1278 = vmatprep.subr.mxu0 0.0
        %1279 = vmatpush1.msra.mxu0 0.0
        %1280 = vmatprep.subr.mxu0 0.0
        %1281 = vmatpush1.msra.mxu0 0.0
        %1282 = vmatprep.subr.mxu0 0.0
        %1283 = vmatpush1.msra.mxu0 0.0
        %1284 = vmatprep.subr.mxu0 0.0
        %1285 = vmatpush1.msra.mxu0 0.0
        %1286 = vmatprep.subr.mxu0 0.0
        %1287 = vmatpush1.msra.mxu0 0.0
        %1288 = vmatprep.subr.mxu0 0.0
        %1289 = vmatpush1.msra.mxu0 0.0
        %1290 = vmatprep.mubr.f32.mxu0 0.0
        %v1291 = vand.u32 %v825, 4294901760
        %1292 = vmatmul.mubr.f32.gmra.mrb[0].mxu0 %v1291
        %v1293 = vpop.f32.mrb[0].mxu0
        %v1294 = vadd.f32 %v1220, %v1293
        %v1295 = vpop.f32.mrb[0].mxu0
        %v1296 = vadd.f32 %v1222, %v1295
        %1297 = vdwg.mxu0
        %v1298 = vsub.f32 0.0, %v1294
        %v1299 = vsub.f32 0.0, %v1296
        %v1300 = vmul.f32 %v1298, 1.442695
        %v1301 = vpow.pop %v1300
        %v1302 = vmul.f32 %v1299, 1.442695
        %v1303 = vpow.pop %v1302
        %v1304 = vadd.f32 %v1301, 1.0
        %v1305 = vadd.f32 %v1303, 1.0
        %v1306 = vrcp.pop %v1304
        %v1307 = vrcp.pop %v1305
        %v1308 = vld [vmem:[%s285] sm:$0xff]
        %v1311 = vcombine.low %v1306, %v1307
        %v1313 = vmul.f32 %v1308, %v1311
        %1314 = vst [vmem:[%s327] sm:$0xff] %v1313
        %s1315 = sand.u32 %s188, 1
        %s1316 = scalar_lea.sflag [#allocation4], %s1315
        %s1317 = sand.u32 %s188, 1
        %s1318 = smul.addr %s1317, 8
        %s1319 = scalar_lea.vmem [#allocation7], %s1318
        // Predicated region
        $region53: #{tpu_custom_call.1} parent=43 // pred_check
          %p1320 = pneg %p198
        $region54: #{tpu_custom_call.1} parent=43 // pred_check_branch
          %1322 = sbr.rel (%p1320) target = $region56
        $region55: #{tpu_custom_call.1} parent=43 // pred_region
          %s1323 = smul.u32 2, %s31
          %s1325 = ssub.s32 128, 128
          %1326 = vsyncadd %s1316, %s1325
          %s1327 = smul.addr %s30, 2
          %s1328 = sadd.s32 %s1323, %s1327
          %s1329 = smul.addr %s1328, 64
          %s1330 = scalar_lea.hbm %s6, %s1329
          %s1332 = sshll.u32 %s1319, 4
          %s1333 = int_to_ptr.vmem [resolvable:$true] %s1332
          %1335 = dma.vmem_to_hbm [thread:$0]  %s1333, 128, %s1330, %s1316
        $region56: #{tpu_custom_call.1} parent=43 // pred_fallthru
          _
      $region44: #{tpu_custom_call.1} parent=5 // pred_fallthru
        _
      %p1336 = scmp.le.s32.totalorder 2, %s21
      // Predicated region
      $region57: #{tpu_custom_call.1} parent=5 // pred_check
        %p1337 = pneg %p1336
      $region58: #{tpu_custom_call.1} parent=5 // pred_check_branch
        %1339 = sbr.rel (%p1337) target = $region60
      $region59: #{tpu_custom_call.1} parent=5 // pred_region
        %s1340 = ssub.s32 %s21, 2
        // Predicated region
        $region61: #{tpu_custom_call.1} parent=59 // pred_check
          %p1341 = pneg %p204
        $region62: #{tpu_custom_call.1} parent=59 // pred_check_branch
          %1343 = sbr.rel (%p1341) target = $region64
        $region63: #{tpu_custom_call.1} parent=59 // pred_region
          %s1344 = sand.u32 %s189, 1
          %s1345 = scalar_lea.sflag [#allocation4], %s1344
          %s1346 = sand.u32 %s189, 1
          %s1347 = smul.addr %s1346, 8
          %s1348 = scalar_lea.vmem [#allocation7], %s1347
          %1349 = dma.done %s1345, 128
        $region64: #{tpu_custom_call.1} parent=59 // pred_fallthru
          _
      $region60: #{tpu_custom_call.1} parent=5 // pred_fallthru
        _
    $region6: #{tpu_custom_call.1} parent=1 // loop_footer
      %s25 = sadd.s32 1, %s21
    $region7: #{tpu_custom_call.1} parent=1 // loop_footer_branch
      %20 = sbr.rel target = $region3
    $region8: #{tpu_custom_call.1} parent=1 // loop_exit
      _
    %1350 = vsyncpa [#allocation3], 1
    %s1351 = scalar_lea.sflag [#allocation3], 1
    %1352 = vsyncpa %s1351, 1
    %1353 = vsyncpa [#allocation6], 1
    %s1354 = scalar_lea.sflag [#allocation6], 1
    %1355 = vsyncpa %s1354, 1
    %1356 = vsyncpa [#allocation4], 1
    %s1357 = scalar_lea.sflag [#allocation4], 1
    %1358 = vsyncpa %s1357, 1

</llo_original>
